<compile_context>
chip_gen: v7x
topology: tpu7x:2x2x1
jax: 0.10.0
libtpu: 0.0.40
codegen_flags: <defaults>
</compile_context>

<pallas_src>
import functools

import jax
import jax.numpy as jnp
from jax.experimental import pallas as pl
from jax.experimental.pallas import tpu as pltpu

PAD_TOKEN_ID = 0
LANE = 128
SUBLANE = 8


def _round_up(x, m):
    return (x + m - 1) // m * m


# ----------------------------------------------------------------------------
# Pallas kernel: (TB, H) last-token rows @ (H, CPAD) -> masked softmax + NLL
# ----------------------------------------------------------------------------
def _head_kernel(h_ref, w_ref, lbl_ref, out_ref, *, num_labels):
    # h_ref   : (TB, H)    bf16  gathered last-token hidden rows (this batch tile)
    # w_ref   : (H, CPAD)  bf16  score weight, classes padded to a 128 multiple
    # lbl_ref : (TB, 1)    int32 labels
    # out_ref : (TB, CPAD) f32   cols [0:C) = softmax probs, col C = per-row NLL
    logits = jnp.dot(h_ref[...], w_ref[...], preferred_element_type=jnp.float32)

    tb, cpad = logits.shape
    cls = jax.lax.broadcasted_iota(jnp.int32, (tb, cpad), 1)
    logits = jnp.where(cls < num_labels, logits, -1e30)        # mask padded classes

    # stable softmax; division via EUP approximate reciprocal (free slot)
    m = jnp.max(logits, axis=-1, keepdims=True)
    e = jnp.exp(logits - m)
    denom = jnp.sum(e, axis=-1, keepdims=True)
    prob = e * pl.reciprocal(denom, approx=True)

    # CrossEntropy: nll = logsumexp(logits) - logits[label]   (exact log path)
    lbl = lbl_ref[...]                                                     # (TB, 1)
    picked = jnp.sum(jnp.where(cls == lbl, logits, 0.0), axis=-1, keepdims=True)
    nll = (jnp.log(denom) + m) - picked                                    # (TB, 1)

    # Pack NLL into padded lane `num_labels` of the lane-dense prob tile.
    out_ref[...] = jnp.where(cls == num_labels, nll, prob)


def pad_score_weight(score_w):
    """Pre-pad + pre-cast nn.Linear(H, C, bias=False) weight to (H, CPAD) bf16.

    Done ONCE at parameter setup time (outside the per-call jit path).
    CPAD reserves one extra lane (column C) for the packed per-row NLL.
    """
    H, C = score_w.shape
    cpad = _round_up(max(C + 1, LANE), LANE)
    return jnp.zeros((H, cpad), jnp.bfloat16).at[:, :C].set(
        score_w.astype(jnp.bfloat16))


def classifier_head(last_hidden_rows, score_w_padded, labels, num_labels):
    """Pallas classification head on pre-gathered last-token rows.

    last_hidden_rows: (B, H) bf16;  score_w_padded: (H, CPAD) bf16.
    Returns (loss_scalar, prob[B, C]).
    """
    B, H = last_hidden_rows.shape
    CPAD = score_w_padded.shape[-1]

    # Batch tile: 256 fills the v6e/v7x MXU rows, 128 fills v5e; tiny batches
    # just get padded up to a sublane multiple.
    if B >= 256:
        TB = 256
    elif B >= 128:
        TB = 128
    else:
        TB = _round_up(B, SUBLANE)
    BPAD = _round_up(B, TB)

    h_pad = jnp.zeros((BPAD, H), jnp.bfloat16).at[:B].set(last_hidden_rows)
    lbl_pad = jnp.zeros((BPAD, 1), jnp.int32).at[:B, 0].set(
        labels.astype(jnp.int32).reshape(B))

    kernel = functools.partial(_head_kernel, num_labels=num_labels)
    cost = pl.CostEstimate(
        flops=2 * BPAD * H * CPAD,
        transcendentals=BPAD * CPAD,
        bytes_accessed=BPAD * H * 2 + H * CPAD * 2 + BPAD * 4 + BPAD * CPAD * 4,
    )

    out = pl.pallas_call(
        kernel,
        out_shape=jax.ShapeDtypeStruct((BPAD, CPAD), jnp.float32),
        grid=(BPAD // TB,),
        in_specs=[
            pl.BlockSpec((TB, H), lambda i: (i, 0)),        # gathered hidden rows
            pl.BlockSpec((H, CPAD), lambda i: (0, 0)),      # resident score weight
            pl.BlockSpec((TB, 1), lambda i: (i, 0)),        # labels column
        ],
        out_specs=pl.BlockSpec((TB, CPAD), lambda i: (i, 0)),
        compiler_params=pltpu.CompilerParams(
            dimension_semantics=("parallel",),
        ),
        cost_estimate=cost,
    )(h_pad, score_w_padded, lbl_pad)

    prob = out[:B, :num_labels]
    nll = out[:B, num_labels]
    # TODO(synk): torch CrossEntropyLoss ignore_index=-100 is not reproduced.
    loss = jnp.mean(nll)
    return loss, prob


# ----------------------------------------------------------------------------
# Minimal deterministic GPT-2-style decoder stand-in (plain JAX glue)
# ----------------------------------------------------------------------------
def init_decoder_params(key, vocab, max_pos, h):
    ks = jax.random.split(key, 6)
    s = 0.02
    return dict(
        wte=jax.random.normal(ks[0], (vocab, h), jnp.float32) * s,
        wpe=jax.random.normal(ks[1], (max_pos, h), jnp.float32) * s,
        ln1_g=jnp.ones((h,), jnp.float32), ln1_b=jnp.zeros((h,), jnp.float32),
        w_qkv=jax.random.normal(ks[2], (h, 3 * h), jnp.float32) * s,
        w_o=jax.random.normal(ks[3], (h, h), jnp.float32) * s,
        ln2_g=jnp.ones((h,), jnp.float32), ln2_b=jnp.zeros((h,), jnp.float32),
        w_fc=jax.random.normal(ks[4], (h, 4 * h), jnp.float32) * s,
        w_proj=jax.random.normal(ks[5], (4 * h, h), jnp.float32) * s,
        lnf_g=jnp.ones((h,), jnp.float32), lnf_b=jnp.zeros((h,), jnp.float32),
    )


def _layernorm(x, g, b):
    m = x.mean(-1, keepdims=True)
    v = ((x - m) ** 2).mean(-1, keepdims=True)
    return (x - m) * jax.lax.rsqrt(v + 1e-5) * g + b


def tiny_gpt2_decoder(params, input_ids, attention_mask):
    """Returns the PRE-final-layernorm hidden state (B, S, H) in f32."""
    B, S = input_ids.shape
    h_dim = params["wte"].shape[-1]
    x = params["wte"][input_ids] + params["wpe"][:S][None]          # (B,S,H) f32

    hn = _layernorm(x, params["ln1_g"], params["ln1_b"])
    qkv = hn @ params["w_qkv"]
    q, k, v = jnp.split(qkv, 3, axis=-1)
    att = jnp.einsum("bqh,bkh->bqk", q, k) / jnp.sqrt(h_dim)
    causal = jnp.tril(jnp.ones((S, S), bool))
    mask = causal[None, :, :] & attention_mask[:, None, :].astype(bool)
    att = jnp.where(mask, att, -1e9)
    att = jax.nn.softmax(att, axis=-1)
    x = x + jnp.einsum("bqk,bkh->bqh", att, v) @ params["w_o"]

    hn = _layernorm(x, params["ln2_g"], params["ln2_b"])
    x = x + jax.nn.gelu(hn @ params["w_fc"]) @ params["w_proj"]
    return x


# ----------------------------------------------------------------------------
# Full forward = decoder (glue) + last-token gather + Pallas classification head
# ----------------------------------------------------------------------------
def model_forward(dec_params, score_w_padded, input_ids, labels, num_labels):
    B, S = input_ids.shape
    attention_mask = (input_ids != PAD_TOKEN_ID).astype(jnp.float32)
    x = tiny_gpt2_decoder(dec_params, input_ids, attention_mask)    # (B,S,H) pre-lnf

    # last_token_loc; `% S` reproduces torch's negative indexing for all-pad rows.
    last_loc = ((jnp.sum((input_ids != PAD_TOKEN_ID).astype(jnp.int32), axis=-1) - 1)
                % S).astype(jnp.int32)
    rows = jnp.take_along_axis(x, last_loc[:, None, None], axis=1)[:, 0]   # (B,H)

    # Final layernorm applied only to the B gathered rows (head consumes only these).
    rows = _layernorm(rows, dec_params["lnf_g"], dec_params["lnf_b"])
    rows = rows.astype(jnp.bfloat16)

    return classifier_head(rows, score_w_padded, labels, num_labels)


# ----------------------------------------------------------------------------
# Pure-JAX reference (mirrors the PyTorch forward exactly)
# ----------------------------------------------------------------------------
def reference_forward(dec_params, score_w, input_ids, labels):
    B, S = input_ids.shape
    attention_mask = (input_ids != PAD_TOKEN_ID).astype(jnp.float32)
    x = tiny_gpt2_decoder(dec_params, input_ids, attention_mask)
    hidden = _layernorm(x, dec_params["lnf_g"], dec_params["lnf_b"])        # (B,S,H)
    last_loc = (jnp.sum((input_ids != PAD_TOKEN_ID).astype(jnp.int32), -1) - 1) % S
    logits_all = hidden @ score_w.astype(jnp.float32)                       # (B,S,C)
    logits = logits_all[jnp.arange(B), last_loc]                            # (B,C)
    prob = jax.nn.softmax(logits, axis=-1)
    lse = jax.nn.logsumexp(logits, axis=-1)
    nll = lse - logits[jnp.arange(B), labels]
    return jnp.mean(nll), prob


if __name__ == "__main__":
    B, S = 2, 8           # batch, sequence length
    VOCAB = 16
    H = 32                # n_embd
    C = 4                 # num_labels

    key = jax.random.PRNGKey(0)
    k_dec, k_score, k_ids, k_lbl = jax.random.split(key, 4)

    dec_params = init_decoder_params(k_dec, VOCAB, S, H)
    # nn.Linear(n_embd, num_labels, bias=False): weight (C, H) -> stored as (H, C)
    score_w = jax.random.normal(k_score, (H, C), jnp.float32) * 0.02
    score_w_padded = pad_score_weight(score_w)   # pre-pad / pre-cast once

    input_ids = jax.random.randint(k_ids, (B, S), 1, VOCAB, dtype=jnp.int32)
    # trailing padding in row 0 so last_token_loc differs per row
    input_ids = input_ids.at[0, 6:].set(PAD_TOKEN_ID)
    labels = jax.random.randint(k_lbl, (B,), 0, C, dtype=jnp.int32)

    fwd = jax.jit(functools.partial(model_forward, num_labels=C))
    loss, prob = fwd(dec_params, score_w_padded, input_ids, labels)
    jax.block_until_ready((loss, prob))

    ref_loss, ref_prob = reference_forward(dec_params, score_w, input_ids, labels)

    assert prob.shape == (B, C)
    assert jnp.all(jnp.isfinite(prob)) and jnp.isfinite(loss)
    assert jnp.allclose(prob.sum(-1), 1.0, atol=1e-2)
    assert jnp.allclose(prob, ref_prob, atol=5e-2)
    assert abs(float(loss) - float(ref_loss)) < 5e-2
    print("KERNEL_OK")
</pallas_src>

<mosaic_0001>
module attributes {stable_mosaic.version = 11 : i64} {
  func.func @_head_kernel(%arg0: i32, %arg1: memref<8x32xbf16, #tpu.memory_space<vmem>>, %arg2: memref<32x128xbf16, #tpu.memory_space<vmem>>, %arg3: memref<8x1xi32, #tpu.memory_space<vmem>>, %arg4: memref<8x128xf32, #tpu.memory_space<vmem>>) attributes {dimension_semantics = [#tpu.dimension_semantics<parallel>], iteration_bounds = array<i64: 1>, scalar_prefetch = 0 : i64, scratch_operands = 0 : i64, tpu.core_type = #tpu.core_type<tc>, window_params = [{transform_indices = @transform_0, window_bounds = array<i64: 8, 32>}, {pipeline_mode = #tpu.pipeline_mode<synchronous>, transform_indices = @transform_1, window_bounds = array<i64: 32, 128>}, {transform_indices = @transform_2, window_bounds = array<i64: 8, 1>}, {transform_indices = @transform_3, window_bounds = array<i64: 8, 128>}]} {
    %c0 = arith.constant 0 : index
    %c0_0 = arith.constant 0 : index
    %0 = vector.load %arg1[%c0, %c0_0] : memref<8x32xbf16, #tpu.memory_space<vmem>>, vector<8x32xbf16>
    %c0_1 = arith.constant 0 : index
    %c0_2 = arith.constant 0 : index
    %1 = vector.load %arg2[%c0_1, %c0_2] : memref<32x128xbf16, #tpu.memory_space<vmem>>, vector<32x128xbf16>
    %cst = arith.constant dense<0.000000e+00> : vector<8x128xf32>
    %2 = tpu.matmul %0, %1, %cst {dimension_numbers = #tpu.dot_dimension_numbers<[1], [0], [0], [1], [0, 0, 1, 1], [], []>} : vector<8x32xbf16>, vector<32x128xbf16>, vector<8x128xf32> -> vector<8x128xf32>
    %3 = tpu.iota {dimensions = array<i32: 1>} : vector<8x128xi32>
    %c4_i32 = arith.constant 4 : i32
    %4 = vector.broadcast %c4_i32 : i32 to vector<8x128xi32>
    %5 = arith.cmpi slt, %3, %4 : vector<8x128xi32>
    %cst_3 = arith.constant -1.000000e+30 : f32
    %6 = vector.broadcast %cst_3 : f32 to vector<8x128xf32>
    %7 = arith.select %5, %2, %6 : vector<8x128xi1>, vector<8x128xf32>
    %cst_4 = arith.constant dense<0xFF800000> : vector<8xf32>
    %8 = vector.multi_reduction <maximumf>, %7, %cst_4 [1] : vector<8x128xf32> to vector<8xf32>
    %9 = vector.shape_cast %8 : vector<8xf32> to vector<8x1xf32>
    %10 = vector.broadcast %9 : vector<8x1xf32> to vector<8x128xf32>
    %11 = arith.subf %7, %10 : vector<8x128xf32>
    %12 = math.exp %11 : vector<8x128xf32>
    %cst_5 = arith.constant dense<0.000000e+00> : vector<8xf32>
    %13 = vector.multi_reduction <add>, %12, %cst_5 [1] : vector<8x128xf32> to vector<8xf32>
    %14 = vector.shape_cast %13 : vector<8xf32> to vector<8x1xf32>
    %15 = tpu.reciprocal %14 {approx = true} : vector<8x1xf32> -> vector<8x1xf32>
    %16 = vector.broadcast %15 : vector<8x1xf32> to vector<8x128xf32>
    %17 = arith.mulf %12, %16 : vector<8x128xf32>
    %c0_6 = arith.constant 0 : index
    %c0_7 = arith.constant 0 : index
    %18 = vector.load %arg3[%c0_6, %c0_7] : memref<8x1xi32, #tpu.memory_space<vmem>>, vector<8x1xi32>
    %19 = vector.broadcast %18 : vector<8x1xi32> to vector<8x128xi32>
    %20 = arith.cmpi eq, %3, %19 : vector<8x128xi32>
    %cst_8 = arith.constant 0.000000e+00 : f32
    %21 = vector.broadcast %cst_8 : f32 to vector<8x128xf32>
    %22 = arith.select %20, %7, %21 : vector<8x128xi1>, vector<8x128xf32>
    %cst_9 = arith.constant dense<0.000000e+00> : vector<8xf32>
    %23 = vector.multi_reduction <add>, %22, %cst_9 [1] : vector<8x128xf32> to vector<8xf32>
    %24 = vector.shape_cast %23 : vector<8xf32> to vector<8x1xf32>
    %25 = math.log %14 : vector<8x1xf32>
    %26 = arith.addf %25, %9 : vector<8x1xf32>
    %27 = arith.subf %26, %24 : vector<8x1xf32>
    %c4_i32_10 = arith.constant 4 : i32
    %28 = vector.broadcast %c4_i32_10 : i32 to vector<8x128xi32>
    %29 = arith.cmpi eq, %3, %28 : vector<8x128xi32>
    %30 = vector.shape_cast %27 : vector<8x1xf32> to vector<8x1xf32>
    %31 = vector.broadcast %30 : vector<8x1xf32> to vector<8x128xf32>
    %32 = arith.select %29, %31, %17 : vector<8x128xi1>, vector<8x128xf32>
    %c0_11 = arith.constant 0 : index
    %c0_12 = arith.constant 0 : index
    %33 = vector.load %arg4[%c0_11, %c0_12] : memref<8x128xf32, #tpu.memory_space<vmem>>, vector<8x128xf32>
    tpu.vector_store %arg4[%c0_11, %c0_12], %32 {strides = array<i32>} : memref<8x128xf32, #tpu.memory_space<vmem>>, vector<8x128xf32>,
    return
  }
  func.func @transform_0(%arg0: i32) -> (i32, i32) {
    %c0_i32 = arith.constant 0 : i32
    %c0_i32_0 = arith.constant 0 : i32
    return %arg0, %c0_i32 : i32, i32
  }
  func.func @transform_1(%arg0: i32) -> (i32, i32) {
    %c0_i32 = arith.constant 0 : i32
    %c0_i32_0 = arith.constant 0 : i32
    %c0_i32_1 = arith.constant 0 : i32
    return %c0_i32, %c0_i32_0 : i32, i32
  }
  func.func @transform_2(%arg0: i32) -> (i32, i32) {
    %c0_i32 = arith.constant 0 : i32
    %c0_i32_0 = arith.constant 0 : i32
    return %arg0, %c0_i32 : i32, i32
  }
  func.func @transform_3(%arg0: i32) -> (i32, i32) {
    %c0_i32 = arith.constant 0 : i32
    %c0_i32_0 = arith.constant 0 : i32
    return %arg0, %c0_i32 : i32, i32
  }
}

</mosaic_0001>

<llo_original>
// kernel: model_forward.1
$region0: #{model_forward.1}
  #allocation0 [shape = 'u32[]', space=smem, size = 0x4, offset = 0x4, fixed_abs, tag = 'smem constant byte address 0x4 - core index']
  #allocation1 [shape = 'u32[144,128]{1,0:T(1,128)}', space=vmem, size = 0x12000, scoped, tag = 'internal scratch']
  %s0 = inlined_call_operand.vmem [shape: bf16[8,32], index: 0, kind: input, shape index: {}]
  %s1 = inlined_call_operand.vmem [shape: bf16[32,128], index: 1, kind: input, shape index: {}]
  %s2 = inlined_call_operand.vmem [shape: s32[8,1], index: 2, kind: input, shape index: {}]
  %s3 = inlined_call_operand.vmem [shape: f32[8,128], index: 3, kind: output, shape index: {}]
  %s4 = sld [smem:[#allocation0]]
  $region22: #{model_forward.1} parent=0
    _
  %s6 = ssub.s32 1, %s4
  %s7 = scalar_select 0, %s6, %s4
  // Predicated region
  $region2: #{model_forward.1} parent=0 // pred_check
    _
  $region3: #{model_forward.1} parent=0 // pred_check_branch
    %9 = sbr.rel (0) target = $region5
  $region4: #{model_forward.1} parent=0 // pred_region
    _
  $region5: #{model_forward.1} parent=0 // pred_fallthru
    _
  // Predicated region
  $region6: #{model_forward.1} parent=0 // pred_check
    _
  $region7: #{model_forward.1} parent=0 // pred_check_branch
    %11 = sbr.rel (0) target = $region9
  $region8: #{model_forward.1} parent=0 // pred_region
    _
  $region9: #{model_forward.1} parent=0 // pred_fallthru
    _
  // Predicated region
  $region10: #{model_forward.1} parent=0 // pred_check
    _
  $region11: #{model_forward.1} parent=0 // pred_check_branch
    %13 = sbr.rel (0) target = $region13
  $region12: #{model_forward.1} parent=0 // pred_region
    _
  $region13: #{model_forward.1} parent=0 // pred_fallthru
    _
  %v15 = vld [vmem:[%s0] sm:$0xf]
  %v16 = vld [vmem:[%s1] sm:$0xf]
  %v17 = vld [vmem:[%s1 + $0x4] sm:$0xf]
  %v18 = vld [vmem:[%s1 + $0x8] sm:$0xf]
  %v19 = vld [vmem:[%s1 + $0xc] sm:$0xf]
  %v24 = vunpack.c.l.b16 %v16
  %v25 = vunpack.c.l.b16 %v17
  %v26 = vunpack.c.l.b16 %v18
  %v27 = vunpack.c.l.b16 %v19
  %v28 = vpack.c.b16 %v25, %v24
  %v29 = vpack.c.b16 %v27, %v26
  %vm32 = vcmask 261120
  %v34 = vsel %vm32, %v15, 0
  %36 = vmatprep.subr.bf16.mxu0 0
  %37 = vmatpush1.bf16.msra.mxu0 %v28
  %38 = vmatprep.subr.bf16.mxu0 0
  %39 = vmatpush1.bf16.msra.mxu0 %v29
  %40 = vmatprep.subr.bf16.mxu0 0
  %41 = vmatpush1.bf16.msra.mxu0 0
  %42 = vmatprep.subr.bf16.mxu0 0
  %43 = vmatpush1.bf16.msra.mxu0 0
  %44 = vmatprep.subr.bf16.mxu0 0
  %45 = vmatpush1.bf16.msra.mxu0 0
  %46 = vmatprep.subr.bf16.mxu0 0
  %47 = vmatpush1.bf16.msra.mxu0 0
  %48 = vmatprep.subr.bf16.mxu0 0
  %49 = vmatpush1.bf16.msra.mxu0 0
  %50 = vmatprep.subr.bf16.mxu0 0
  %51 = vmatpush1.bf16.msra.mxu0 0
  %52 = vmatprep.subr.bf16.mxu0 0
  %53 = vmatpush1.bf16.msra.mxu0 0
  %54 = vmatprep.subr.bf16.mxu0 0
  %55 = vmatpush1.bf16.msra.mxu0 0
  %56 = vmatprep.subr.bf16.mxu0 0
  %57 = vmatpush1.bf16.msra.mxu0 0
  %58 = vmatprep.subr.bf16.mxu0 0
  %59 = vmatpush1.bf16.msra.mxu0 0
  %60 = vmatprep.subr.bf16.mxu0 0
  %61 = vmatpush1.bf16.msra.mxu0 0
  %62 = vmatprep.subr.bf16.mxu0 0
  %63 = vmatpush1.bf16.msra.mxu0 0
  %64 = vmatprep.subr.bf16.mxu0 0
  %65 = vmatpush1.bf16.msra.mxu0 0
  %66 = vmatprep.subr.bf16.mxu0 0
  %67 = vmatpush1.bf16.msra.mxu0 0
  %68 = vmatprep.mubr.bf16.mxu0 0
  %69 = vmatmul.mubr.bf16.gmra.mrb[0].mxu0 %v34
  %v70 = vpop.f32.mrb[0].mxu0
  %v71 = vadd.f32 0.0, %v70
  %v72 = vpop.f32.mrb[0].mxu0
  %v73 = vpop.f32.mrb[0].mxu0
  %v74 = vpop.f32.mrb[0].mxu0
  %75 = vdwg.mxu0
  %v76 = vlaneseq
  %v77 = vand.u32 %v76, 127
  %vm78 = vcmp.lt.s32.totalorder %v77, 4
  %v79 = vsel %vm78, %v71, -1e+30
  %80 = vmax.xlane.f32.xlu0 %v79
  %v81 = vpop.xlane.xlu0 %80
  %v82 = vsub.f32 %v79, %v81
  %v83 = vmul.f32 %v82, 1.442695
  %v84 = vpow.pop %v83
  %85 = vadd.xlane.f32.xlu0 %v84
  %v86 = vpop.xlane.xlu0 %85
  %v87 = vrcp.pop %v86
  %v88 = vmul.f32 %v84, %v87
  %v89 = vld [vmem:[%s2] sm:$0xff]
  %90 = vset.pattern.permute.xlu0 0
  %91 = vperm.xlu0 %90, %v89
  %v92 = vpop.permute.xlu0 %91
  %vm93 = vcmp.eq.s32.totalorder %v77, %v92
  %v94 = vsel %vm93, %v79, 0.0
  %95 = vadd.xlane.f32.xlu0 %v94
  %v96 = vpop.xlane.xlu0 %95
  %v97 = vlog2.pop %v86
  %v98 = vmul.f32 %v97, 0.6931472
  %v99 = vadd.f32 %v98, %v81
  %v100 = vsub.f32 %v99, %v96
  %vm101 = vcmp.eq.s32.totalorder %v77, 4
  %v102 = vsel %vm101, %v100, %v88
  %103 = vst [vmem:[%s3] sm:$0xff] %v102
  // Predicated region
  $region14: #{model_forward.1} parent=0 // pred_check
    _
  $region15: #{model_forward.1} parent=0 // pred_check_branch
    %105 = sbr.rel (0) target = $region17
  $region16: #{model_forward.1} parent=0 // pred_region
    _
  $region17: #{model_forward.1} parent=0 // pred_fallthru
    _
  // Predicated region
  $region18: #{model_forward.1} parent=0 // pred_check
    _
  $region19: #{model_forward.1} parent=0 // pred_check_branch
    %107 = sbr.rel (0) target = $region21
  $region20: #{model_forward.1} parent=0 // pred_region
    _
  $region21: #{model_forward.1} parent=0 // pred_fallthru
    _

</llo_original>
